<compile_context>
chip_gen: v7x
topology: tpu7x:2x2x1
jax: 0.10.0
libtpu: 0.0.40
codegen_flags: <defaults>
</compile_context>

<pallas_src>
import functools

import jax
import jax.numpy as jnp
from jax.experimental import pallas as pl
from jax.experimental.pallas import tpu as pltpu


# ----------------------------------------------------------------------------
# helpers
# ----------------------------------------------------------------------------
def _round_up(v, m):
    return (v + m - 1) // m * m


def _vmem_limit_bytes():
    """~75% of physical VMEM, capped at 100 MiB (v5e/v6e: 128 MiB, v7x: 64 MiB)."""
    try:
        cap = int(pltpu.get_tpu_info().vmem_capacity_bytes)
    except Exception:
        cap = 64 * 1024 * 1024
    return min(cap * 3 // 4, 100 * 1024 * 1024)


_FUSED_MAX_BYTES = 12 * 1024 * 1024       # fused path keeps everything resident
_SUPPORT_RESIDENT_MAX_BYTES = 24 * 1024 * 1024


def _fits_fused(n, in_f, h1, f23):
    resident = 2 * (n * in_f + n * n + in_f * h1 + h1 * f23)   # bf16 inputs
    resident += 2 * n * h1 + 2 * n * f23                       # bf16 intermediates
    resident += 4 * n * h1 + 4 * n * f23                       # f32 temporaries / output
    return resident <= _FUSED_MAX_BYTES


# ----------------------------------------------------------------------------
# Fused path: whole forward in one VMEM-resident pallas_call (small graphs)
# ----------------------------------------------------------------------------
def _fused_kernel(x_ref, adj_ref, w1_ref, w23_ref, out_ref):
    # s1 = X @ W1
    s1 = jnp.dot(x_ref[...], w1_ref[...], preferred_element_type=jnp.float32)
    # hidden1 = relu(adj @ s1), kept bf16 for the second MXU pass
    h1 = jnp.dot(adj_ref[...], s1.astype(jnp.bfloat16),
                 preferred_element_type=jnp.float32)
    h1 = jnp.maximum(h1, 0.0).astype(jnp.bfloat16)
    # s23 = hidden1 @ [W2 | W3]
    s23 = jnp.dot(h1, w23_ref[...], preferred_element_type=jnp.float32)
    # [mu | logvar] = adj @ s23
    out_ref[...] = jnp.dot(adj_ref[...], s23.astype(jnp.bfloat16),
                           preferred_element_type=jnp.float32)


def _fused_forward(x_bf16, adj_bf16, w1_bf16, w23_bf16):
    n, in_f = x_bf16.shape
    h1 = w1_bf16.shape[1]
    f23 = w23_bf16.shape[1]
    cost = pl.CostEstimate(
        flops=2 * n * (in_f * h1 + n * h1 + h1 * f23 + n * f23),
        transcendentals=0,
        bytes_accessed=2 * (n * in_f + n * n + in_f * h1 + h1 * f23) + 4 * n * f23,
    )
    vspec = pl.BlockSpec(memory_space=pltpu.MemorySpace.VMEM)
    return pl.pallas_call(
        _fused_kernel,
        out_shape=jax.ShapeDtypeStruct((n, f23), jnp.float32),
        in_specs=[vspec, vspec, vspec, vspec],
        out_specs=vspec,
        compiler_params=pltpu.CompilerParams(vmem_limit_bytes=_vmem_limit_bytes()),
        cost_estimate=cost,
    )(x_bf16, adj_bf16, w1_bf16, w23_bf16)


# ----------------------------------------------------------------------------
# Tiled path kernel 1: support = X @ W (row-tiled, W resident)
# ----------------------------------------------------------------------------
def _xw_kernel(x_ref, w_ref, o_ref):
    o_ref[...] = jnp.dot(
        x_ref[...], w_ref[...], preferred_element_type=jnp.float32
    ).astype(o_ref.dtype)


def feature_transform(x_bf16, w_bf16, *, out_dtype=jnp.bfloat16, tm=512):
    n, in_f = x_bf16.shape
    in_f_w, out_f = w_bf16.shape
    assert in_f == in_f_w
    tm = min(tm, n)
    assert n % tm == 0
    out_itemsize = jnp.dtype(out_dtype).itemsize
    cost = pl.CostEstimate(
        flops=2 * n * in_f * out_f,
        transcendentals=0,
        bytes_accessed=2 * n * in_f + 2 * in_f * out_f + n * out_f * out_itemsize,
    )
    return pl.pallas_call(
        _xw_kernel,
        out_shape=jax.ShapeDtypeStruct((n, out_f), out_dtype),
        grid_spec=pltpu.PrefetchScalarGridSpec(
            num_scalar_prefetch=0,
            grid=(n // tm,),
            in_specs=[
                pl.BlockSpec((tm, in_f), lambda i: (i, 0)),     # X row tile
                pl.BlockSpec((in_f, out_f), lambda i: (0, 0)),  # W resident
            ],
            out_specs=pl.BlockSpec((tm, out_f), lambda i: (i, 0)),
        ),
        compiler_params=pltpu.CompilerParams(
            dimension_semantics=("parallel",),
            vmem_limit_bytes=_vmem_limit_bytes(),
        ),
        cost_estimate=cost,
    )(x_bf16, w_bf16)


# ----------------------------------------------------------------------------
# Tiled path kernel 2: out = act(adj @ support), grid = (row tile i, reduction k)
# ----------------------------------------------------------------------------
def _propagate_kernel(adj_ref, s_ref, o_ref, acc_ref, *, apply_relu, tk,
                      support_resident):
    k = pl.program_id(1)

    @pl.when(k == 0)
    def _():
        acc_ref[...] = jnp.zeros_like(acc_ref)

    if support_resident:
        start = pl.multiple_of(k * tk, tk)
        s_blk = s_ref[pl.ds(start, tk), :]      # support DMA'd once, sliced in VMEM
    else:
        s_blk = s_ref[...]

    acc_ref[...] += jnp.dot(adj_ref[...], s_blk, preferred_element_type=jnp.float32)

    @pl.when(k == pl.num_programs(1) - 1)
    def _():
        out = acc_ref[...]
        if apply_relu:
            out = jnp.maximum(out, 0.0)          # relu on the f32 accumulator
        o_ref[...] = out.astype(o_ref.dtype)


def propagate(adj_bf16, support_bf16, *, apply_relu, out_dtype=jnp.float32,
              tm=512, tk=512):
    n, n2 = adj_bf16.shape
    n3, f = support_bf16.shape
    assert n == n2 == n3
    tm = min(tm, n)
    tk = min(tk, n)
    # Keep >= 2 row tiles where possible so the "parallel" axis shards across
    # v7x's two TensorCores.
    if n // tm < 2 and n >= 256 and n % 256 == 0:
        tm = n // 2
    assert n % tm == 0 and n % tk == 0

    support_resident = support_bf16.size * 2 <= _SUPPORT_RESIDENT_MAX_BYTES
    if support_resident:
        s_spec = pl.BlockSpec((n, f), lambda i, k: (0, 0))   # resident, read once
        support_reads = n * f * 2
    else:
        s_spec = pl.BlockSpec((tk, f), lambda i, k: (k, 0))  # re-streamed per row tile
        support_reads = (n // tm) * n * f * 2

    out_itemsize = jnp.dtype(out_dtype).itemsize
    cost = pl.CostEstimate(
        flops=2 * n * n * f,
        transcendentals=0,
        bytes_accessed=n * n * 2 + support_reads + n * f * out_itemsize,
    )
    return pl.pallas_call(
        functools.partial(_propagate_kernel, apply_relu=apply_relu, tk=tk,
                          support_resident=support_resident),
        out_shape=jax.ShapeDtypeStruct((n, f), out_dtype),
        grid_spec=pltpu.PrefetchScalarGridSpec(
            num_scalar_prefetch=0,
            grid=(n // tm, n // tk),
            in_specs=[
                pl.BlockSpec((tm, tk), lambda i, k: (i, k)),   # adj tile
                s_spec,                                        # support
            ],
            out_specs=pl.BlockSpec((tm, f), lambda i, k: (i, 0)),
            scratch_shapes=[pltpu.VMEM((tm, f), jnp.float32)], # f32 accumulator
        ),
        compiler_params=pltpu.CompilerParams(
            dimension_semantics=("parallel", "arbitrary"),
            vmem_limit_bytes=_vmem_limit_bytes(),
        ),
        cost_estimate=cost,
    )(adj_bf16, support_bf16)


# ----------------------------------------------------------------------------
# Forward wrapper
# ----------------------------------------------------------------------------
def prepare_gcn_vae_inputs(adj, w1, w2, w3, *, tile=512, force_tiled=False):
    """One-time preprocessing (adj / weights are constant across scGNN steps):
    bf16 casts, W2|W3 concat, and padding of adj to the tile (tiled path only)."""
    n = adj.shape[0]
    w23 = jnp.concatenate([w2, w3], axis=1)
    use_fused = (not force_tiled) and _fits_fused(
        n, w1.shape[0], w1.shape[1], w23.shape[1])
    if use_fused:
        adj_p = adj
    else:
        n_pad = _round_up(n, tile)
        adj_p = jnp.pad(adj, ((0, n_pad - n), (0, n_pad - n)))
    return {
        "adj_bf16": adj_p.astype(jnp.bfloat16),
        "w1_bf16": w1.astype(jnp.bfloat16),
        "w23_bf16": w23.astype(jnp.bfloat16),
        "hidden_dim2": int(w2.shape[1]),
        "use_fused": bool(use_fused),
    }


@functools.partial(jax.jit, static_argnames=("hidden_dim2", "use_fused"))
def gcn_vae_forward(x, adj_bf16, w1_bf16, w23_bf16, *, hidden_dim2, use_fused):
    n = x.shape[0]
    n_pad = adj_bf16.shape[0]
    x_bf16 = x.astype(jnp.bfloat16)
    if n_pad != n:
        x_bf16 = jnp.pad(x_bf16, ((0, n_pad - n), (0, 0)))

    if use_fused:
        mu_logvar = _fused_forward(x_bf16, adj_bf16, w1_bf16, w23_bf16)
    else:
        # gc1: relu(adj @ (x @ W1)), hidden1 emitted directly as bf16
        s1 = feature_transform(x_bf16, w1_bf16, out_dtype=jnp.bfloat16)
        hidden1 = propagate(adj_bf16, s1, apply_relu=True, out_dtype=jnp.bfloat16)
        # gc2 / gc3 fused into one lane-dense RHS -> a single adjacency pass
        s23 = feature_transform(hidden1, w23_bf16, out_dtype=jnp.bfloat16)
        mu_logvar = propagate(adj_bf16, s23, apply_relu=False, out_dtype=jnp.float32)

    mu_logvar = mu_logvar[:n]
    mu = mu_logvar[:, :hidden_dim2]
    logvar = mu_logvar[:, hidden_dim2:]
    z = mu  # eval-mode reparameterize returns mu
    return z, mu, logvar


# ----------------------------------------------------------------------------
# Test harness
# ----------------------------------------------------------------------------
def xavier_uniform(key, in_features, out_features, dtype=jnp.float32):
    # torch.nn.init.xavier_uniform_: U(-a, a), a = sqrt(6 / (fan_in + fan_out))
    bound = (6.0 / (in_features + out_features)) ** 0.5
    return jax.random.uniform(
        key, (in_features, out_features), dtype=dtype, minval=-bound, maxval=bound
    )


def gcn_vae_reference(x, adj, w1, w2, w3):
    """Plain-JAX reference with the same bf16-input / f32-accumulate numerics."""
    def gcn(inp, w, act):
        s = jnp.dot(inp.astype(jnp.bfloat16), w.astype(jnp.bfloat16),
                    preferred_element_type=jnp.float32).astype(jnp.bfloat16)
        out = jnp.dot(adj.astype(jnp.bfloat16), s, preferred_element_type=jnp.float32)
        return act(out)

    h1 = gcn(x, w1, lambda v: jnp.maximum(v, 0.0))
    mu = gcn(h1, w2, lambda v: v)
    logvar = gcn(h1, w3, lambda v: v)
    return mu, logvar


if __name__ == "__main__":
    key = jax.random.PRNGKey(0)
    k_small, k_big = jax.random.split(key)

    def run_case(case_key, n, in_f, hd1, hd2, force_tiled):
        kx, ka, k1, k2, k3 = jax.random.split(case_key, 5)
        x = jax.random.normal(kx, (n, in_f), dtype=jnp.float32)

        # symmetric, row-normalized dense adjacency (stand-in for the sparse adj)
        a_raw = jax.random.uniform(ka, (n, n), dtype=jnp.float32)
        adj = (a_raw + a_raw.T) * 0.5
        adj = adj / jnp.sum(adj, axis=1, keepdims=True)

        w1 = xavier_uniform(k1, in_f, hd1)
        w2 = xavier_uniform(k2, hd1, hd2)
        w3 = xavier_uniform(k3, hd1, hd2)

        prep = prepare_gcn_vae_inputs(adj, w1, w2, w3, force_tiled=force_tiled)
        z, mu, logvar = jax.block_until_ready(
            gcn_vae_forward(
                x, prep["adj_bf16"], prep["w1_bf16"], prep["w23_bf16"],
                hidden_dim2=prep["hidden_dim2"], use_fused=prep["use_fused"],
            )
        )

        mu_ref, logvar_ref = gcn_vae_reference(x, adj, w1, w2, w3)
        assert z.shape == (n, hd2)
        assert mu.shape == (n, hd2) and logvar.shape == (n, hd2)
        assert jnp.allclose(mu, mu_ref, atol=3e-2, rtol=3e-2)
        assert jnp.allclose(logvar, logvar_ref, atol=3e-2, rtol=3e-2)
        assert jnp.allclose(z, mu)

    # Small graph -> single fused, fully VMEM-resident call.
    run_case(k_small, n=256, in_f=128, hd1=128, hd2=64, force_tiled=False)
    # Larger graph -> tiled path (512-wide tiles, resident support, 2 row tiles).
    run_case(k_big, n=1024, in_f=128, hd1=128, hd2=64, force_tiled=True)

    print("KERNEL_OK")
</pallas_src>

<mosaic_0001>
module attributes {stable_mosaic.version = 11 : i64} {
  func.func @_fused_kernel(%arg0: memref<256x128xbf16, #tpu.memory_space<vmem>>, %arg1: memref<256x256xbf16, #tpu.memory_space<vmem>>, %arg2: memref<128x128xbf16, #tpu.memory_space<vmem>>, %arg3: memref<128x128xbf16, #tpu.memory_space<vmem>>, %arg4: memref<256x128xf32, #tpu.memory_space<vmem>>) attributes {dimension_semantics = [], scalar_prefetch = 0 : i64, scratch_operands = 0 : i64, tpu.core_type = #tpu.core_type<tc>} {
    %c0 = arith.constant 0 : index
    %c0_0 = arith.constant 0 : index
    %0 = vector.load %arg0[%c0, %c0_0] : memref<256x128xbf16, #tpu.memory_space<vmem>>, vector<256x128xbf16>
    %c0_1 = arith.constant 0 : index
    %c0_2 = arith.constant 0 : index
    %1 = vector.load %arg2[%c0_1, %c0_2] : memref<128x128xbf16, #tpu.memory_space<vmem>>, vector<128x128xbf16>
    %cst = arith.constant dense<0.000000e+00> : vector<256x128xf32>
    %2 = tpu.matmul %0, %1, %cst {dimension_numbers = #tpu.dot_dimension_numbers<[1], [0], [0], [1], [0, 0, 1, 1], [], []>} : vector<256x128xbf16>, vector<128x128xbf16>, vector<256x128xf32> -> vector<256x128xf32>
    %c0_3 = arith.constant 0 : index
    %c0_4 = arith.constant 0 : index
    %3 = vector.load %arg1[%c0_3, %c0_4] : memref<256x256xbf16, #tpu.memory_space<vmem>>, vector<256x256xbf16>
    %4 = arith.truncf %2 : vector<256x128xf32> to vector<256x128xbf16>
    %cst_5 = arith.constant dense<0.000000e+00> : vector<256x128xf32>
    %5 = tpu.matmul %3, %4, %cst_5 {dimension_numbers = #tpu.dot_dimension_numbers<[1], [0], [0], [1], [0, 0, 1, 1], [], []>} : vector<256x256xbf16>, vector<256x128xbf16>, vector<256x128xf32> -> vector<256x128xf32>
    %cst_6 = arith.constant 0.000000e+00 : f32
    %6 = vector.broadcast %cst_6 : f32 to vector<256x128xf32>
    %7 = arith.maximumf %5, %6 : vector<256x128xf32>
    %8 = arith.truncf %7 : vector<256x128xf32> to vector<256x128xbf16>
    %c0_7 = arith.constant 0 : index
    %c0_8 = arith.constant 0 : index
    %9 = vector.load %arg3[%c0_7, %c0_8] : memref<128x128xbf16, #tpu.memory_space<vmem>>, vector<128x128xbf16>
    %cst_9 = arith.constant dense<0.000000e+00> : vector<256x128xf32>
    %10 = tpu.matmul %8, %9, %cst_9 {dimension_numbers = #tpu.dot_dimension_numbers<[1], [0], [0], [1], [0, 0, 1, 1], [], []>} : vector<256x128xbf16>, vector<128x128xbf16>, vector<256x128xf32> -> vector<256x128xf32>
    %c0_10 = arith.constant 0 : index
    %c0_11 = arith.constant 0 : index
    %11 = vector.load %arg1[%c0_10, %c0_11] : memref<256x256xbf16, #tpu.memory_space<vmem>>, vector<256x256xbf16>
    %12 = arith.truncf %10 : vector<256x128xf32> to vector<256x128xbf16>
    %cst_12 = arith.constant dense<0.000000e+00> : vector<256x128xf32>
    %13 = tpu.matmul %11, %12, %cst_12 {dimension_numbers = #tpu.dot_dimension_numbers<[1], [0], [0], [1], [0, 0, 1, 1], [], []>} : vector<256x256xbf16>, vector<256x128xbf16>, vector<256x128xf32> -> vector<256x128xf32>
    %c0_13 = arith.constant 0 : index
    %c0_14 = arith.constant 0 : index
    %14 = vector.load %arg4[%c0_13, %c0_14] : memref<256x128xf32, #tpu.memory_space<vmem>>, vector<256x128xf32>
    tpu.vector_store %arg4[%c0_13, %c0_14], %13 {strides = array<i32>} : memref<256x128xf32, #tpu.memory_space<vmem>>, vector<256x128xf32>,
    return
  }
}

</mosaic_0001>

<llo_original>
// kernel: gcn_vae_forward.1
$region0: #{gcn_vae_forward.1}
  #allocation0 [shape = 'u32[]', space=smem, size = 0x4, offset = 0x4, fixed_abs, tag = 'smem constant byte address 0x4 - core index']
  #allocation1 [shape = 'u32[144,128]{1,0:T(1,128)}', space=vmem, size = 0x12000, scoped, tag = 'internal scratch']
  %s0 = inlined_call_operand.vmem [shape: bf16[256,128], index: 0, kind: input, shape index: {}]
  %s1 = inlined_call_operand.vmem [shape: bf16[256,256], index: 1, kind: input, shape index: {}]
  %s2 = inlined_call_operand.vmem [shape: bf16[128,128], index: 2, kind: input, shape index: {}]
  %s3 = inlined_call_operand.vmem [shape: bf16[128,128], index: 3, kind: input, shape index: {}]
  %s4 = inlined_call_operand.vmem [shape: f32[256,128], index: 4, kind: output, shape index: {}]
  %s5 = sld [smem:[#allocation0]]
  $region26: #{gcn_vae_forward.1} parent=0
    _
  %s7 = ssub.s32 1, %s5
  %s8 = scalar_select 0, %s7, %s5
  // Predicated region
  $region2: #{gcn_vae_forward.1} parent=0 // pred_check
    _
  $region3: #{gcn_vae_forward.1} parent=0 // pred_check_branch
    %10 = sbr.rel (0) target = $region5
  $region4: #{gcn_vae_forward.1} parent=0 // pred_region
    _
  $region5: #{gcn_vae_forward.1} parent=0 // pred_fallthru
    _
  // Predicated region
  $region6: #{gcn_vae_forward.1} parent=0 // pred_check
    _
  $region7: #{gcn_vae_forward.1} parent=0 // pred_check_branch
    %12 = sbr.rel (0) target = $region9
  $region8: #{gcn_vae_forward.1} parent=0 // pred_region
    _
  $region9: #{gcn_vae_forward.1} parent=0 // pred_fallthru
    _
  // Predicated region
  $region10: #{gcn_vae_forward.1} parent=0 // pred_check
    _
  $region11: #{gcn_vae_forward.1} parent=0 // pred_check_branch
    %14 = sbr.rel (0) target = $region13
  $region12: #{gcn_vae_forward.1} parent=0 // pred_region
    _
  $region13: #{gcn_vae_forward.1} parent=0 // pred_fallthru
    _
  // Predicated region
  $region14: #{gcn_vae_forward.1} parent=0 // pred_check
    _
  $region15: #{gcn_vae_forward.1} parent=0 // pred_check_branch
    %16 = sbr.rel (0) target = $region17
  $region16: #{gcn_vae_forward.1} parent=0 // pred_region
    _
  $region17: #{gcn_vae_forward.1} parent=0 // pred_fallthru
    _
  %v18 = vld [vmem:[%s0] sm:$0xf]
  %v19 = vld [vmem:[%s0 + $0x4] sm:$0xf]
  %v20 = vld [vmem:[%s0 + $0x8] sm:$0xf]
  %v21 = vld [vmem:[%s0 + $0xc] sm:$0xf]
  %v22 = vld [vmem:[%s0 + $0x10] sm:$0xf]
  %v23 = vld [vmem:[%s0 + $0x14] sm:$0xf]
  %v24 = vld [vmem:[%s0 + $0x18] sm:$0xf]
  %v25 = vld [vmem:[%s0 + $0x1c] sm:$0xf]
  %v26 = vld [vmem:[%s0 + $0x20] sm:$0xf]
  %v27 = vld [vmem:[%s0 + $0x24] sm:$0xf]
  %v28 = vld [vmem:[%s0 + $0x28] sm:$0xf]
  %v29 = vld [vmem:[%s0 + $0x2c] sm:$0xf]
  %v30 = vld [vmem:[%s0 + $0x30] sm:$0xf]
  %v31 = vld [vmem:[%s0 + $0x34] sm:$0xf]
  %v32 = vld [vmem:[%s0 + $0x38] sm:$0xf]
  %v33 = vld [vmem:[%s0 + $0x3c] sm:$0xf]
  %v34 = vld [vmem:[%s0 + $0x40] sm:$0xf]
  %v35 = vld [vmem:[%s0 + $0x44] sm:$0xf]
  %v36 = vld [vmem:[%s0 + $0x48] sm:$0xf]
  %v37 = vld [vmem:[%s0 + $0x4c] sm:$0xf]
  %v38 = vld [vmem:[%s0 + $0x50] sm:$0xf]
  %v39 = vld [vmem:[%s0 + $0x54] sm:$0xf]
  %v40 = vld [vmem:[%s0 + $0x58] sm:$0xf]
  %v41 = vld [vmem:[%s0 + $0x5c] sm:$0xf]
  %v42 = vld [vmem:[%s0 + $0x60] sm:$0xf]
  %v43 = vld [vmem:[%s0 + $0x64] sm:$0xf]
  %v44 = vld [vmem:[%s0 + $0x68] sm:$0xf]
  %v45 = vld [vmem:[%s0 + $0x6c] sm:$0xf]
  %v46 = vld [vmem:[%s0 + $0x70] sm:$0xf]
  %v47 = vld [vmem:[%s0 + $0x74] sm:$0xf]
  %v48 = vld [vmem:[%s0 + $0x78] sm:$0xf]
  %v49 = vld [vmem:[%s0 + $0x7c] sm:$0xf]
  %v50 = vld [vmem:[%s2] sm:$0xf]
  %v51 = vld [vmem:[%s2 + $0x4] sm:$0xf]
  %v52 = vld [vmem:[%s2 + $0x8] sm:$0xf]
  %v53 = vld [vmem:[%s2 + $0xc] sm:$0xf]
  %v54 = vld [vmem:[%s2 + $0x10] sm:$0xf]
  %v55 = vld [vmem:[%s2 + $0x14] sm:$0xf]
  %v56 = vld [vmem:[%s2 + $0x18] sm:$0xf]
  %v57 = vld [vmem:[%s2 + $0x1c] sm:$0xf]
  %v58 = vld [vmem:[%s2 + $0x20] sm:$0xf]
  %v59 = vld [vmem:[%s2 + $0x24] sm:$0xf]
  %v60 = vld [vmem:[%s2 + $0x28] sm:$0xf]
  %v61 = vld [vmem:[%s2 + $0x2c] sm:$0xf]
  %v62 = vld [vmem:[%s2 + $0x30] sm:$0xf]
  %v63 = vld [vmem:[%s2 + $0x34] sm:$0xf]
  %v64 = vld [vmem:[%s2 + $0x38] sm:$0xf]
  %v65 = vld [vmem:[%s2 + $0x3c] sm:$0xf]
  %v98 = vunpack.c.l.b16 %v18
  %v99 = vunpack.c.l.b16 %v19
  %v100 = vunpack.c.l.b16 %v20
  %v101 = vunpack.c.l.b16 %v21
  %v102 = vunpack.c.l.b16 %v22
  %v103 = vunpack.c.l.b16 %v23
  %v104 = vunpack.c.l.b16 %v24
  %v105 = vunpack.c.l.b16 %v25
  %v106 = vunpack.c.l.b16 %v26
  %v107 = vunpack.c.l.b16 %v27
  %v108 = vunpack.c.l.b16 %v28
  %v109 = vunpack.c.l.b16 %v29
  %v110 = vunpack.c.l.b16 %v30
  %v111 = vunpack.c.l.b16 %v31
  %v112 = vunpack.c.l.b16 %v32
  %v113 = vunpack.c.l.b16 %v33
  %v114 = vunpack.c.l.b16 %v34
  %v115 = vunpack.c.l.b16 %v35
  %v116 = vunpack.c.l.b16 %v36
  %v117 = vunpack.c.l.b16 %v37
  %v118 = vunpack.c.l.b16 %v38
  %v119 = vunpack.c.l.b16 %v39
  %v120 = vunpack.c.l.b16 %v40
  %v121 = vunpack.c.l.b16 %v41
  %v122 = vunpack.c.l.b16 %v42
  %v123 = vunpack.c.l.b16 %v43
  %v124 = vunpack.c.l.b16 %v44
  %v125 = vunpack.c.l.b16 %v45
  %v126 = vunpack.c.l.b16 %v46
  %v127 = vunpack.c.l.b16 %v47
  %v128 = vunpack.c.l.b16 %v48
  %v129 = vunpack.c.l.b16 %v49
  %v130 = vpack.c.b16 %v99, %v98
  %v131 = vpack.c.b16 %v101, %v100
  %v132 = vpack.c.b16 %v103, %v102
  %v133 = vpack.c.b16 %v105, %v104
  %v134 = vpack.c.b16 %v107, %v106
  %v135 = vpack.c.b16 %v109, %v108
  %v136 = vpack.c.b16 %v111, %v110
  %v137 = vpack.c.b16 %v113, %v112
  %v138 = vpack.c.b16 %v115, %v114
  %v139 = vpack.c.b16 %v117, %v116
  %v140 = vpack.c.b16 %v119, %v118
  %v141 = vpack.c.b16 %v121, %v120
  %v142 = vpack.c.b16 %v123, %v122
  %v143 = vpack.c.b16 %v125, %v124
  %v144 = vpack.c.b16 %v127, %v126
  %v145 = vpack.c.b16 %v129, %v128
  %v178 = vunpack.c.l.b16 %v50
  %v179 = vunpack.c.l.b16 %v51
  %v180 = vunpack.c.l.b16 %v52
  %v181 = vunpack.c.l.b16 %v53
  %v182 = vunpack.c.l.b16 %v54
  %v183 = vunpack.c.l.b16 %v55
  %v184 = vunpack.c.l.b16 %v56
  %v185 = vunpack.c.l.b16 %v57
  %v186 = vunpack.c.l.b16 %v58
  %v187 = vunpack.c.l.b16 %v59
  %v188 = vunpack.c.l.b16 %v60
  %v189 = vunpack.c.l.b16 %v61
  %v190 = vunpack.c.l.b16 %v62
  %v191 = vunpack.c.l.b16 %v63
  %v192 = vunpack.c.l.b16 %v64
  %v193 = vunpack.c.l.b16 %v65
  %v194 = vpack.c.b16 %v179, %v178
  %v195 = vpack.c.b16 %v181, %v180
  %v196 = vpack.c.b16 %v183, %v182
  %v197 = vpack.c.b16 %v185, %v184
  %v198 = vpack.c.b16 %v187, %v186
  %v199 = vpack.c.b16 %v189, %v188
  %v200 = vpack.c.b16 %v191, %v190
  %v201 = vpack.c.b16 %v193, %v192
  %210 = vmatprep.subr.bf16.mxu0 0
  %211 = vmatpush1.bf16.msra.mxu0 %v194
  %212 = vmatprep.subr.bf16.mxu0 0
  %213 = vmatpush1.bf16.msra.mxu0 %v195
  %214 = vmatprep.subr.bf16.mxu0 0
  %215 = vmatpush1.bf16.msra.mxu0 %v196
  %216 = vmatprep.subr.bf16.mxu0 0
  %217 = vmatpush1.bf16.msra.mxu0 %v197
  %218 = vmatprep.subr.bf16.mxu0 0
  %219 = vmatpush1.bf16.msra.mxu0 %v198
  %220 = vmatprep.subr.bf16.mxu0 0
  %221 = vmatpush1.bf16.msra.mxu0 %v199
  %222 = vmatprep.subr.bf16.mxu0 0
  %223 = vmatpush1.bf16.msra.mxu0 %v200
  %224 = vmatprep.subr.bf16.mxu0 0
  %225 = vmatpush1.bf16.msra.mxu0 %v201
  %226 = vmatprep.subr.bf16.mxu0 0
  %227 = vmatpush1.bf16.msra.mxu0 0
  %228 = vmatprep.subr.bf16.mxu0 0
  %229 = vmatpush1.bf16.msra.mxu0 0
  %230 = vmatprep.subr.bf16.mxu0 0
  %231 = vmatpush1.bf16.msra.mxu0 0
  %232 = vmatprep.subr.bf16.mxu0 0
  %233 = vmatpush1.bf16.msra.mxu0 0
  %234 = vmatprep.subr.bf16.mxu0 0
  %235 = vmatpush1.bf16.msra.mxu0 0
  %236 = vmatprep.subr.bf16.mxu0 0
  %237 = vmatpush1.bf16.msra.mxu0 0
  %238 = vmatprep.subr.bf16.mxu0 0
  %239 = vmatpush1.bf16.msra.mxu0 0
  %240 = vmatprep.subr.bf16.mxu0 0
  %241 = vmatpush1.bf16.msra.mxu0 0
  %242 = vmatprep.mubr.bf16.mxu0 0
  %243 = vmatmul.mubr.bf16.gmra.mrb[0].mxu0 %v130
  %v244 = vpop.f32.mrb[0].mxu0
  %v245 = vadd.f32 0.0, %v244
  %v246 = vpop.f32.mrb[0].mxu0
  %v247 = vpop.f32.mrb[0].mxu0
  %v248 = vadd.f32 0.0, %v247
  %v249 = vpop.f32.mrb[0].mxu0
  %250 = vmatprep.mubr.bf16.mxu0 0
  %251 = vmatmul.mubr.bf16.gmra.mrb[0].mxu0 %v131
  %v252 = vpop.f32.mrb[0].mxu0
  %v253 = vadd.f32 0.0, %v252
  %v254 = vpop.f32.mrb[0].mxu0
  %v255 = vpop.f32.mrb[0].mxu0
  %v256 = vadd.f32 0.0, %v255
  %v257 = vpop.f32.mrb[0].mxu0
  %258 = vmatprep.mubr.bf16.mxu0 0
  %259 = vmatmul.mubr.bf16.gmra.mrb[0].mxu0 %v132
  %v260 = vpop.f32.mrb[0].mxu0
  %v261 = vadd.f32 0.0, %v260
  %v262 = vpop.f32.mrb[0].mxu0
  %v263 = vpop.f32.mrb[0].mxu0
  %v264 = vadd.f32 0.0, %v263
  %v265 = vpop.f32.mrb[0].mxu0
  %266 = vmatprep.mubr.bf16.mxu0 0
  %267 = vmatmul.mubr.bf16.gmra.mrb[0].mxu0 %v133
  %v268 = vpop.f32.mrb[0].mxu0
  %v269 = vadd.f32 0.0, %v268
  %v270 = vpop.f32.mrb[0].mxu0
  %v271 = vpop.f32.mrb[0].mxu0
  %v272 = vadd.f32 0.0, %v271
  %v273 = vpop.f32.mrb[0].mxu0
  %274 = vmatprep.mubr.bf16.mxu0 0
  %275 = vmatmul.mubr.bf16.gmra.mrb[0].mxu0 %v134
  %v276 = vpop.f32.mrb[0].mxu0
  %v277 = vadd.f32 0.0, %v276
  %v278 = vpop.f32.mrb[0].mxu0
  %v279 = vpop.f32.mrb[0].mxu0
  %v280 = vadd.f32 0.0, %v279
  %v281 = vpop.f32.mrb[0].mxu0
  %282 = vmatprep.mubr.bf16.mxu0 0
  %283 = vmatmul.mubr.bf16.gmra.mrb[0].mxu0 %v135
  %v284 = vpop.f32.mrb[0].mxu0
  %v285 = vadd.f32 0.0, %v284
  %v286 = vpop.f32.mrb[0].mxu0
  %v287 = vpop.f32.mrb[0].mxu0
  %v288 = vadd.f32 0.0, %v287
  %v289 = vpop.f32.mrb[0].mxu0
  %290 = vmatprep.mubr.bf16.mxu0 0
  %291 = vmatmul.mubr.bf16.gmra.mrb[0].mxu0 %v136
  %v292 = vpop.f32.mrb[0].mxu0
  %v293 = vadd.f32 0.0, %v292
  %v294 = vpop.f32.mrb[0].mxu0
  %v295 = vpop.f32.mrb[0].mxu0
  %v296 = vadd.f32 0.0, %v295
  %v297 = vpop.f32.mrb[0].mxu0
  %298 = vmatprep.mubr.bf16.mxu0 0
  %299 = vmatmul.mubr.bf16.gmra.mrb[0].mxu0 %v137
  %v300 = vpop.f32.mrb[0].mxu0
  %v301 = vadd.f32 0.0, %v300
  %v302 = vpop.f32.mrb[0].mxu0
  %v303 = vpop.f32.mrb[0].mxu0
  %v304 = vadd.f32 0.0, %v303
  %v305 = vpop.f32.mrb[0].mxu0
  %306 = vmatprep.mubr.bf16.mxu0 0
  %307 = vmatmul.mubr.bf16.gmra.mrb[0].mxu0 %v138
  %v308 = vpop.f32.mrb[0].mxu0
  %v309 = vadd.f32 0.0, %v308
  %v310 = vpop.f32.mrb[0].mxu0
  %v311 = vpop.f32.mrb[0].mxu0
  %v312 = vadd.f32 0.0, %v311
  %v313 = vpop.f32.mrb[0].mxu0
  %314 = vmatprep.mubr.bf16.mxu0 0
  %315 = vmatmul.mubr.bf16.gmra.mrb[0].mxu0 %v139
  %v316 = vpop.f32.mrb[0].mxu0
  %v317 = vadd.f32 0.0, %v316
  %v318 = vpop.f32.mrb[0].mxu0
  %v319 = vpop.f32.mrb[0].mxu0
  %v320 = vadd.f32 0.0, %v319
  %v321 = vpop.f32.mrb[0].mxu0
  %322 = vmatprep.mubr.bf16.mxu0 0
  %323 = vmatmul.mubr.bf16.gmra.mrb[0].mxu0 %v140
  %v324 = vpop.f32.mrb[0].mxu0
  %v325 = vadd.f32 0.0, %v324
  %v326 = vpop.f32.mrb[0].mxu0
  %v327 = vpop.f32.mrb[0].mxu0
  %v328 = vadd.f32 0.0, %v327
  %v329 = vpop.f32.mrb[0].mxu0
  %330 = vmatprep.mubr.bf16.mxu0 0
  %331 = vmatmul.mubr.bf16.gmra.mrb[0].mxu0 %v141
  %v332 = vpop.f32.mrb[0].mxu0
  %v333 = vadd.f32 0.0, %v332
  %v334 = vpop.f32.mrb[0].mxu0
  %v335 = vpop.f32.mrb[0].mxu0
  %v336 = vadd.f32 0.0, %v335
  %v337 = vpop.f32.mrb[0].mxu0
  %338 = vmatprep.mubr.bf16.mxu0 0
  %339 = vmatmul.mubr.bf16.gmra.mrb[0].mxu0 %v142
  %v340 = vpop.f32.mrb[0].mxu0
  %v341 = vadd.f32 0.0, %v340
  %v342 = vpop.f32.mrb[0].mxu0
  %v343 = vpop.f32.mrb[0].mxu0
  %v344 = vadd.f32 0.0, %v343
  %v345 = vpop.f32.mrb[0].mxu0
  %346 = vmatprep.mubr.bf16.mxu0 0
  %347 = vmatmul.mubr.bf16.gmra.mrb[0].mxu0 %v143
  %v348 = vpop.f32.mrb[0].mxu0
  %v349 = vadd.f32 0.0, %v348
  %v350 = vpop.f32.mrb[0].mxu0
  %v351 = vpop.f32.mrb[0].mxu0
  %v352 = vadd.f32 0.0, %v351
  %v353 = vpop.f32.mrb[0].mxu0
  %354 = vmatprep.mubr.bf16.mxu0 0
  %355 = vmatmul.mubr.bf16.gmra.mrb[0].mxu0 %v144
  %v356 = vpop.f32.mrb[0].mxu0
  %v357 = vadd.f32 0.0, %v356
  %v358 = vpop.f32.mrb[0].mxu0
  %v359 = vpop.f32.mrb[0].mxu0
  %v360 = vadd.f32 0.0, %v359
  %v361 = vpop.f32.mrb[0].mxu0
  %362 = vmatprep.mubr.bf16.mxu0 0
  %363 = vmatmul.mubr.bf16.gmra.mrb[0].mxu0 %v145
  %v364 = vpop.f32.mrb[0].mxu0
  %v365 = vadd.f32 0.0, %v364
  %v366 = vpop.f32.mrb[0].mxu0
  %v367 = vpop.f32.mrb[0].mxu0
  %v368 = vadd.f32 0.0, %v367
  %v369 = vpop.f32.mrb[0].mxu0
  %370 = vdwg.mxu0
  %v371 = vld [vmem:[%s1] sm:$0xff]
  %v372 = vld [vmem:[%s1 + $0x8] sm:$0xff]
  %v373 = vld [vmem:[%s1 + $0x10] sm:$0xff]
  %v374 = vld [vmem:[%s1 + $0x18] sm:$0xff]
  %v375 = vld [vmem:[%s1 + $0x20] sm:$0xff]
  %v376 = vld [vmem:[%s1 + $0x28] sm:$0xff]
  %v377 = vld [vmem:[%s1 + $0x30] sm:$0xff]
  %v378 = vld [vmem:[%s1 + $0x38] sm:$0xff]
  %v379 = vld [vmem:[%s1 + $0x40] sm:$0xff]
  %v380 = vld [vmem:[%s1 + $0x48] sm:$0xff]
  %v381 = vld [vmem:[%s1 + $0x50] sm:$0xff]
  %v382 = vld [vmem:[%s1 + $0x58] sm:$0xff]
  %v383 = vld [vmem:[%s1 + $0x60] sm:$0xff]
  %v384 = vld [vmem:[%s1 + $0x68] sm:$0xff]
  %v385 = vld [vmem:[%s1 + $0x70] sm:$0xff]
  %v386 = vld [vmem:[%s1 + $0x78] sm:$0xff]
  %v387 = vld [vmem:[%s1 + $0x80] sm:$0xff]
  %v388 = vld [vmem:[%s1 + $0x88] sm:$0xff]
  %v389 = vld [vmem:[%s1 + $0x90] sm:$0xff]
  %v390 = vld [vmem:[%s1 + $0x98] sm:$0xff]
  %v391 = vld [vmem:[%s1 + $0xa0] sm:$0xff]
  %v392 = vld [vmem:[%s1 + $0xa8] sm:$0xff]
  %v393 = vld [vmem:[%s1 + $0xb0] sm:$0xff]
  %v394 = vld [vmem:[%s1 + $0xb8] sm:$0xff]
  %v395 = vld [vmem:[%s1 + $0xc0] sm:$0xff]
  %v396 = vld [vmem:[%s1 + $0xc8] sm:$0xff]
  %v397 = vld [vmem:[%s1 + $0xd0] sm:$0xff]
  %v398 = vld [vmem:[%s1 + $0xd8] sm:$0xff]
  %v399 = vld [vmem:[%s1 + $0xe0] sm:$0xff]
  %v400 = vld [vmem:[%s1 + $0xe8] sm:$0xff]
  %v401 = vld [vmem:[%s1 + $0xf0] sm:$0xff]
  %v402 = vld [vmem:[%s1 + $0xf8] sm:$0xff]
  %v403 = vpack.c.bf16 %v248, %v245
  %v404 = vpack.c.bf16 %v256, %v253
  %v405 = vpack.c.bf16 %v264, %v261
  %v406 = vpack.c.bf16 %v272, %v269
  %v407 = vpack.c.bf16 %v280, %v277
  %v408 = vpack.c.bf16 %v288, %v285
  %v409 = vpack.c.bf16 %v296, %v293
  %v410 = vpack.c.bf16 %v304, %v301
  %v411 = vpack.c.bf16 %v312, %v309
  %v412 = vpack.c.bf16 %v320, %v317
  %v413 = vpack.c.bf16 %v328, %v325
  %v414 = vpack.c.bf16 %v336, %v333
  %v415 = vpack.c.bf16 %v344, %v341
  %v416 = vpack.c.bf16 %v352, %v349
  %v417 = vpack.c.bf16 %v360, %v357
  %v418 = vpack.c.bf16 %v368, %v365
  %v451 = vunpack.c.l.b16 %v371
  %v452 = vunpack.c.h.b16 %v371
  %v453 = vunpack.c.l.b16 %v372
  %v454 = vunpack.c.h.b16 %v372
  %v455 = vunpack.c.l.b16 %v373
  %v456 = vunpack.c.h.b16 %v373
  %v457 = vunpack.c.l.b16 %v374
  %v458 = vunpack.c.h.b16 %v374
  %v459 = vunpack.c.l.b16 %v375
  %v460 = vunpack.c.h.b16 %v375
  %v461 = vunpack.c.l.b16 %v376
  %v462 = vunpack.c.h.b16 %v376
  %v463 = vunpack.c.l.b16 %v377
  %v464 = vunpack.c.h.b16 %v377
  %v465 = vunpack.c.l.b16 %v378
  %v466 = vunpack.c.h.b16 %v378
  %v467 = vunpack.c.l.b16 %v379
  %v468 = vunpack.c.h.b16 %v379
  %v469 = vunpack.c.l.b16 %v380
  %v470 = vunpack.c.h.b16 %v380
  %v471 = vunpack.c.l.b16 %v381
  %v472 = vunpack.c.h.b16 %v381
  %v473 = vunpack.c.l.b16 %v382
  %v474 = vunpack.c.h.b16 %v382
  %v475 = vunpack.c.l.b16 %v383
  %v476 = vunpack.c.h.b16 %v383
  %v477 = vunpack.c.l.b16 %v384
  %v478 = vunpack.c.h.b16 %v384
  %v479 = vunpack.c.l.b16 %v385
  %v480 = vunpack.c.h.b16 %v385
  %v481 = vunpack.c.l.b16 %v386
  %v482 = vunpack.c.h.b16 %v386
  %v483 = vunpack.c.l.b16 %v387
  %v484 = vunpack.c.h.b16 %v387
  %v485 = vunpack.c.l.b16 %v388
  %v486 = vunpack.c.h.b16 %v388
  %v487 = vunpack.c.l.b16 %v389
  %v488 = vunpack.c.h.b16 %v389
  %v489 = vunpack.c.l.b16 %v390
  %v490 = vunpack.c.h.b16 %v390
  %v491 = vunpack.c.l.b16 %v391
  %v492 = vunpack.c.h.b16 %v391
  %v493 = vunpack.c.l.b16 %v392
  %v494 = vunpack.c.h.b16 %v392
  %v495 = vunpack.c.l.b16 %v393
  %v496 = vunpack.c.h.b16 %v393
  %v497 = vunpack.c.l.b16 %v394
  %v498 = vunpack.c.h.b16 %v394
  %v499 = vunpack.c.l.b16 %v395
  %v500 = vunpack.c.h.b16 %v395
  %v501 = vunpack.c.l.b16 %v396
  %v502 = vunpack.c.h.b16 %v396
  %v503 = vunpack.c.l.b16 %v397
  %v504 = vunpack.c.h.b16 %v397
  %v505 = vunpack.c.l.b16 %v398
  %v506 = vunpack.c.h.b16 %v398
  %v507 = vunpack.c.l.b16 %v399
  %v508 = vunpack.c.h.b16 %v399
  %v509 = vunpack.c.l.b16 %v400
  %v510 = vunpack.c.h.b16 %v400
  %v511 = vunpack.c.l.b16 %v401
  %v512 = vunpack.c.h.b16 %v401
  %v513 = vunpack.c.l.b16 %v402
  %v514 = vunpack.c.h.b16 %v402
  %v515 = vpack.c.b16 %v453, %v451
  %v516 = vpack.c.b16 %v454, %v452
  %v517 = vpack.c.b16 %v457, %v455
  %v518 = vpack.c.b16 %v458, %v456
  %v519 = vpack.c.b16 %v461, %v459
  %v520 = vpack.c.b16 %v462, %v460
  %v521 = vpack.c.b16 %v465, %v463
  %v522 = vpack.c.b16 %v466, %v464
  %v523 = vpack.c.b16 %v469, %v467
  %v524 = vpack.c.b16 %v470, %v468
  %v525 = vpack.c.b16 %v473, %v471
  %v526 = vpack.c.b16 %v474, %v472
  %v527 = vpack.c.b16 %v477, %v475
  %v528 = vpack.c.b16 %v478, %v476
  %v529 = vpack.c.b16 %v481, %v479
  %v530 = vpack.c.b16 %v482, %v480
  %v531 = vpack.c.b16 %v485, %v483
  %v532 = vpack.c.b16 %v486, %v484
  %v533 = vpack.c.b16 %v489, %v487
  %v534 = vpack.c.b16 %v490, %v488
  %v535 = vpack.c.b16 %v493, %v491
  %v536 = vpack.c.b16 %v494, %v492
  %v537 = vpack.c.b16 %v497, %v495
  %v538 = vpack.c.b16 %v498, %v496
  %v539 = vpack.c.b16 %v501, %v499
  %v540 = vpack.c.b16 %v502, %v500
  %v541 = vpack.c.b16 %v505, %v503
  %v542 = vpack.c.b16 %v506, %v504
  %v543 = vpack.c.b16 %v509, %v507
  %v544 = vpack.c.b16 %v510, %v508
  %v545 = vpack.c.b16 %v513, %v511
  %v546 = vpack.c.b16 %v514, %v512
  %579 = vmatprep.subr.bf16.mxu0 0
  %580 = vmatpush1.bf16.msra.mxu0 %v403
  %581 = vmatprep.subr.bf16.mxu0 0
  %582 = vmatpush1.bf16.msra.mxu0 %v404
  %583 = vmatprep.subr.bf16.mxu0 0
  %584 = vmatpush1.bf16.msra.mxu0 %v405
  %585 = vmatprep.subr.bf16.mxu0 0
  %586 = vmatpush1.bf16.msra.mxu0 %v406
  %587 = vmatprep.subr.bf16.mxu0 0
  %588 = vmatpush1.bf16.msra.mxu0 %v407
  %589 = vmatprep.subr.bf16.mxu0 0
  %590 = vmatpush1.bf16.msra.mxu0 %v408
  %591 = vmatprep.subr.bf16.mxu0 0
  %592 = vmatpush1.bf16.msra.mxu0 %v409
  %593 = vmatprep.subr.bf16.mxu0 0
  %594 = vmatpush1.bf16.msra.mxu0 %v410
  %595 = vmatprep.subr.bf16.mxu0 0
  %596 = vmatpush1.bf16.msra.mxu0 %v411
  %597 = vmatprep.subr.bf16.mxu0 0
  %598 = vmatpush1.bf16.msra.mxu0 %v412
  %599 = vmatprep.subr.bf16.mxu0 0
  %600 = vmatpush1.bf16.msra.mxu0 %v413
  %601 = vmatprep.subr.bf16.mxu0 0
  %602 = vmatpush1.bf16.msra.mxu0 %v414
  %603 = vmatprep.subr.bf16.mxu0 0
  %604 = vmatpush1.bf16.msra.mxu0 %v415
  %605 = vmatprep.subr.bf16.mxu0 0
  %606 = vmatpush1.bf16.msra.mxu0 %v416
  %607 = vmatprep.subr.bf16.mxu0 0
  %608 = vmatpush1.bf16.msra.mxu0 %v417
  %609 = vmatprep.subr.bf16.mxu0 0
  %610 = vmatpush1.bf16.msra.mxu0 %v418
  %611 = vmatprep.mubr.bf16.mxu0 %v516
  %612 = vmatmul.mubr.bf16.gmra.mrb[0].mxu0 %v515
  %v613 = vpop.f32.mrb[0].mxu0
  %v614 = vadd.f32 0.0, %v613
  %v615 = vpop.f32.mrb[0].mxu0
  %v616 = vpop.f32.mrb[0].mxu0
  %v617 = vadd.f32 0.0, %v616
  %v618 = vpop.f32.mrb[0].mxu0
  %619 = vmatprep.mubr.bf16.mxu0 %v518
  %620 = vmatmul.mubr.bf16.gmra.mrb[0].mxu0 %v517
  %v621 = vpop.f32.mrb[0].mxu0
  %v622 = vadd.f32 0.0, %v621
  %v623 = vpop.f32.mrb[0].mxu0
  %v624 = vpop.f32.mrb[0].mxu0
  %v625 = vadd.f32 0.0, %v624
  %v626 = vpop.f32.mrb[0].mxu0
  %627 = vmatprep.mubr.bf16.mxu0 %v520
  %628 = vmatmul.mubr.bf16.gmra.mrb[0].mxu0 %v519
  %v629 = vpop.f32.mrb[0].mxu0
  %v630 = vadd.f32 0.0, %v629
  %v631 = vpop.f32.mrb[0].mxu0
  %v632 = vpop.f32.mrb[0].mxu0
  %v633 = vadd.f32 0.0, %v632
  %v634 = vpop.f32.mrb[0].mxu0
  %635 = vmatprep.mubr.bf16.mxu0 %v522
  %636 = vmatmul.mubr.bf16.gmra.mrb[0].mxu0 %v521
  %v637 = vpop.f32.mrb[0].mxu0
  %v638 = vadd.f32 0.0, %v637
  %v639 = vpop.f32.mrb[0].mxu0
  %v640 = vpop.f32.mrb[0].mxu0
  %v641 = vadd.f32 0.0, %v640
  %v642 = vpop.f32.mrb[0].mxu0
  %643 = vmatprep.mubr.bf16.mxu0 %v524
  %644 = vmatmul.mubr.bf16.gmra.mrb[0].mxu0 %v523
  %v645 = vpop.f32.mrb[0].mxu0
  %v646 = vadd.f32 0.0, %v645
  %v647 = vpop.f32.mrb[0].mxu0
  %v648 = vpop.f32.mrb[0].mxu0
  %v649 = vadd.f32 0.0, %v648
  %v650 = vpop.f32.mrb[0].mxu0
  %651 = vmatprep.mubr.bf16.mxu0 %v526
  %652 = vmatmul.mubr.bf16.gmra.mrb[0].mxu0 %v525
  %v653 = vpop.f32.mrb[0].mxu0
  %v654 = vadd.f32 0.0, %v653
  %v655 = vpop.f32.mrb[0].mxu0
  %v656 = vpop.f32.mrb[0].mxu0
  %v657 = vadd.f32 0.0, %v656
  %v658 = vpop.f32.mrb[0].mxu0
  %659 = vmatprep.mubr.bf16.mxu0 %v528
  %660 = vmatmul.mubr.bf16.gmra.mrb[0].mxu0 %v527
  %v661 = vpop.f32.mrb[0].mxu0
  %v662 = vadd.f32 0.0, %v661
  %v663 = vpop.f32.mrb[0].mxu0
  %v664 = vpop.f32.mrb[0].mxu0
  %v665 = vadd.f32 0.0, %v664
  %v666 = vpop.f32.mrb[0].mxu0
  %667 = vmatprep.mubr.bf16.mxu0 %v530
  %668 = vmatmul.mubr.bf16.gmra.mrb[0].mxu0 %v529
  %v669 = vpop.f32.mrb[0].mxu0
  %v670 = vadd.f32 0.0, %v669
  %v671 = vpop.f32.mrb[0].mxu0
  %v672 = vpop.f32.mrb[0].mxu0
  %v673 = vadd.f32 0.0, %v672
  %v674 = vpop.f32.mrb[0].mxu0
  %675 = vmatprep.mubr.bf16.mxu0 %v532
  %676 = vmatmul.mubr.bf16.gmra.mrb[0].mxu0 %v531
  %v677 = vpop.f32.mrb[0].mxu0
  %v678 = vadd.f32 0.0, %v677
  %v679 = vpop.f32.mrb[0].mxu0
  %v680 = vpop.f32.mrb[0].mxu0
  %v681 = vadd.f32 0.0, %v680
  %v682 = vpop.f32.mrb[0].mxu0
  %683 = vmatprep.mubr.bf16.mxu0 %v534
  %684 = vmatmul.mubr.bf16.gmra.mrb[0].mxu0 %v533
  %v685 = vpop.f32.mrb[0].mxu0
  %v686 = vadd.f32 0.0, %v685
  %v687 = vpop.f32.mrb[0].mxu0
  %v688 = vpop.f32.mrb[0].mxu0
  %v689 = vadd.f32 0.0, %v688
  %v690 = vpop.f32.mrb[0].mxu0
  %691 = vmatprep.mubr.bf16.mxu0 %v536
  %692 = vmatmul.mubr.bf16.gmra.mrb[0].mxu0 %v535
  %v693 = vpop.f32.mrb[0].mxu0
  %v694 = vadd.f32 0.0, %v693
  %v695 = vpop.f32.mrb[0].mxu0
  %v696 = vpop.f32.mrb[0].mxu0
  %v697 = vadd.f32 0.0, %v696
  %v698 = vpop.f32.mrb[0].mxu0
  %699 = vmatprep.mubr.bf16.mxu0 %v538
  %700 = vmatmul.mubr.bf16.gmra.mrb[0].mxu0 %v537
  %v701 = vpop.f32.mrb[0].mxu0
  %v702 = vadd.f32 0.0, %v701
  %v703 = vpop.f32.mrb[0].mxu0
  %v704 = vpop.f32.mrb[0].mxu0
  %v705 = vadd.f32 0.0, %v704
  %v706 = vpop.f32.mrb[0].mxu0
  %707 = vmatprep.mubr.bf16.mxu0 %v540
  %708 = vmatmul.mubr.bf16.gmra.mrb[0].mxu0 %v539
  %v709 = vpop.f32.mrb[0].mxu0
  %v710 = vadd.f32 0.0, %v709
  %v711 = vpop.f32.mrb[0].mxu0
  %v712 = vpop.f32.mrb[0].mxu0
  %v713 = vadd.f32 0.0, %v712
  %v714 = vpop.f32.mrb[0].mxu0
  %715 = vmatprep.mubr.bf16.mxu0 %v542
  %716 = vmatmul.mubr.bf16.gmra.mrb[0].mxu0 %v541
  %v717 = vpop.f32.mrb[0].mxu0
  %v718 = vadd.f32 0.0, %v717
  %v719 = vpop.f32.mrb[0].mxu0
  %v720 = vpop.f32.mrb[0].mxu0
  %v721 = vadd.f32 0.0, %v720
  %v722 = vpop.f32.mrb[0].mxu0
  %723 = vmatprep.mubr.bf16.mxu0 %v544
  %724 = vmatmul.mubr.bf16.gmra.mrb[0].mxu0 %v543
  %v725 = vpop.f32.mrb[0].mxu0
  %v726 = vadd.f32 0.0, %v725
  %v727 = vpop.f32.mrb[0].mxu0
  %v728 = vpop.f32.mrb[0].mxu0
  %v729 = vadd.f32 0.0, %v728
  %v730 = vpop.f32.mrb[0].mxu0
  %731 = vmatprep.mubr.bf16.mxu0 %v546
  %732 = vmatmul.mubr.bf16.gmra.mrb[0].mxu0 %v545
  %v733 = vpop.f32.mrb[0].mxu0
  %v734 = vadd.f32 0.0, %v733
  %v735 = vpop.f32.mrb[0].mxu0
  %v736 = vpop.f32.mrb[0].mxu0
  %v737 = vadd.f32 0.0, %v736
  %v738 = vpop.f32.mrb[0].mxu0
  %739 = vdwg.mxu0
  %v740 = vmax.f32 %v614, 0.0
  %v741 = vmax.f32 %v617, 0.0
  %v742 = vmax.f32 %v622, 0.0
  %v743 = vmax.f32 %v625, 0.0
  %v744 = vmax.f32 %v630, 0.0
  %v745 = vmax.f32 %v633, 0.0
  %v746 = vmax.f32 %v638, 0.0
  %v747 = vmax.f32 %v641, 0.0
  %v748 = vmax.f32 %v646, 0.0
  %v749 = vmax.f32 %v649, 0.0
  %v750 = vmax.f32 %v654, 0.0
  %v751 = vmax.f32 %v657, 0.0
  %v752 = vmax.f32 %v662, 0.0
  %v753 = vmax.f32 %v665, 0.0
  %v754 = vmax.f32 %v670, 0.0
  %v755 = vmax.f32 %v673, 0.0
  %v756 = vmax.f32 %v678, 0.0
  %v757 = vmax.f32 %v681, 0.0
  %v758 = vmax.f32 %v686, 0.0
  %v759 = vmax.f32 %v689, 0.0
  %v760 = vmax.f32 %v694, 0.0
  %v761 = vmax.f32 %v697, 0.0
  %v762 = vmax.f32 %v702, 0.0
  %v763 = vmax.f32 %v705, 0.0
  %v764 = vmax.f32 %v710, 0.0
  %v765 = vmax.f32 %v713, 0.0
  %v766 = vmax.f32 %v718, 0.0
  %v767 = vmax.f32 %v721, 0.0
  %v768 = vmax.f32 %v726, 0.0
  %v769 = vmax.f32 %v729, 0.0
  %v770 = vmax.f32 %v734, 0.0
  %v771 = vmax.f32 %v737, 0.0
  %v772 = vpack.c.bf16 %v741, %v740
  %v773 = vpack.c.bf16 %v743, %v742
  %v774 = vpack.c.bf16 %v745, %v744
  %v775 = vpack.c.bf16 %v747, %v746
  %v776 = vpack.c.bf16 %v749, %v748
  %v777 = vpack.c.bf16 %v751, %v750
  %v778 = vpack.c.bf16 %v753, %v752
  %v779 = vpack.c.bf16 %v755, %v754
  %v780 = vpack.c.bf16 %v757, %v756
  %v781 = vpack.c.bf16 %v759, %v758
  %v782 = vpack.c.bf16 %v761, %v760
  %v783 = vpack.c.bf16 %v763, %v762
  %v784 = vpack.c.bf16 %v765, %v764
  %v785 = vpack.c.bf16 %v767, %v766
  %v786 = vpack.c.bf16 %v769, %v768
  %v787 = vpack.c.bf16 %v771, %v770
  %v788 = vld [vmem:[%s3] sm:$0xf]
  %v789 = vld [vmem:[%s3 + $0x4] sm:$0xf]
  %v790 = vld [vmem:[%s3 + $0x8] sm:$0xf]
  %v791 = vld [vmem:[%s3 + $0xc] sm:$0xf]
  %v792 = vld [vmem:[%s3 + $0x10] sm:$0xf]
  %v793 = vld [vmem:[%s3 + $0x14] sm:$0xf]
  %v794 = vld [vmem:[%s3 + $0x18] sm:$0xf]
  %v795 = vld [vmem:[%s3 + $0x1c] sm:$0xf]
  %v796 = vld [vmem:[%s3 + $0x20] sm:$0xf]
  %v797 = vld [vmem:[%s3 + $0x24] sm:$0xf]
  %v798 = vld [vmem:[%s3 + $0x28] sm:$0xf]
  %v799 = vld [vmem:[%s3 + $0x2c] sm:$0xf]
  %v800 = vld [vmem:[%s3 + $0x30] sm:$0xf]
  %v801 = vld [vmem:[%s3 + $0x34] sm:$0xf]
  %v802 = vld [vmem:[%s3 + $0x38] sm:$0xf]
  %v803 = vld [vmem:[%s3 + $0x3c] sm:$0xf]
  %v820 = vunpack.c.l.b16 %v788
  %v821 = vunpack.c.l.b16 %v789
  %v822 = vunpack.c.l.b16 %v790
  %v823 = vunpack.c.l.b16 %v791
  %v824 = vunpack.c.l.b16 %v792
  %v825 = vunpack.c.l.b16 %v793
  %v826 = vunpack.c.l.b16 %v794
  %v827 = vunpack.c.l.b16 %v795
  %v828 = vunpack.c.l.b16 %v796
  %v829 = vunpack.c.l.b16 %v797
  %v830 = vunpack.c.l.b16 %v798
  %v831 = vunpack.c.l.b16 %v799
  %v832 = vunpack.c.l.b16 %v800
  %v833 = vunpack.c.l.b16 %v801
  %v834 = vunpack.c.l.b16 %v802
  %v835 = vunpack.c.l.b16 %v803
  %v836 = vpack.c.b16 %v821, %v820
  %v837 = vpack.c.b16 %v823, %v822
  %v838 = vpack.c.b16 %v825, %v824
  %v839 = vpack.c.b16 %v827, %v826
  %v840 = vpack.c.b16 %v829, %v828
  %v841 = vpack.c.b16 %v831, %v830
  %v842 = vpack.c.b16 %v833, %v832
  %v843 = vpack.c.b16 %v835, %v834
  %852 = vmatprep.subr.bf16.mxu0 0
  %853 = vmatpush1.bf16.msra.mxu0 %v836
  %854 = vmatprep.subr.bf16.mxu0 0
  %855 = vmatpush1.bf16.msra.mxu0 %v837
  %856 = vmatprep.subr.bf16.mxu0 0
  %857 = vmatpush1.bf16.msra.mxu0 %v838
  %858 = vmatprep.subr.bf16.mxu0 0
  %859 = vmatpush1.bf16.msra.mxu0 %v839
  %860 = vmatprep.subr.bf16.mxu0 0
  %861 = vmatpush1.bf16.msra.mxu0 %v840
  %862 = vmatprep.subr.bf16.mxu0 0
  %863 = vmatpush1.bf16.msra.mxu0 %v841
  %864 = vmatprep.subr.bf16.mxu0 0
  %865 = vmatpush1.bf16.msra.mxu0 %v842
  %866 = vmatprep.subr.bf16.mxu0 0
  %867 = vmatpush1.bf16.msra.mxu0 %v843
  %868 = vmatprep.subr.bf16.mxu0 0
  %869 = vmatpush1.bf16.msra.mxu0 0
  %870 = vmatprep.subr.bf16.mxu0 0
  %871 = vmatpush1.bf16.msra.mxu0 0
  %872 = vmatprep.subr.bf16.mxu0 0
  %873 = vmatpush1.bf16.msra.mxu0 0
  %874 = vmatprep.subr.bf16.mxu0 0
  %875 = vmatpush1.bf16.msra.mxu0 0
  %876 = vmatprep.subr.bf16.mxu0 0
  %877 = vmatpush1.bf16.msra.mxu0 0
  %878 = vmatprep.subr.bf16.mxu0 0
  %879 = vmatpush1.bf16.msra.mxu0 0
  %880 = vmatprep.subr.bf16.mxu0 0
  %881 = vmatpush1.bf16.msra.mxu0 0
  %882 = vmatprep.subr.bf16.mxu0 0
  %883 = vmatpush1.bf16.msra.mxu0 0
  %884 = vmatprep.mubr.bf16.mxu0 0
  %885 = vmatmul.mubr.bf16.gmra.mrb[0].mxu0 %v772
  %v886 = vpop.f32.mrb[0].mxu0
  %v887 = vadd.f32 0.0, %v886
  %v888 = vpop.f32.mrb[0].mxu0
  %v889 = vpop.f32.mrb[0].mxu0
  %v890 = vadd.f32 0.0, %v889
  %v891 = vpop.f32.mrb[0].mxu0
  %892 = vmatprep.mubr.bf16.mxu0 0
  %893 = vmatmul.mubr.bf16.gmra.mrb[0].mxu0 %v773
  %v894 = vpop.f32.mrb[0].mxu0
  %v895 = vadd.f32 0.0, %v894
  %v896 = vpop.f32.mrb[0].mxu0
  %v897 = vpop.f32.mrb[0].mxu0
  %v898 = vadd.f32 0.0, %v897
  %v899 = vpop.f32.mrb[0].mxu0
  %900 = vmatprep.mubr.bf16.mxu0 0
  %901 = vmatmul.mubr.bf16.gmra.mrb[0].mxu0 %v774
  %v902 = vpop.f32.mrb[0].mxu0
  %v903 = vadd.f32 0.0, %v902
  %v904 = vpop.f32.mrb[0].mxu0
  %v905 = vpop.f32.mrb[0].mxu0
  %v906 = vadd.f32 0.0, %v905
  %v907 = vpop.f32.mrb[0].mxu0
  %908 = vmatprep.mubr.bf16.mxu0 0
  %909 = vmatmul.mubr.bf16.gmra.mrb[0].mxu0 %v775
  %v910 = vpop.f32.mrb[0].mxu0
  %v911 = vadd.f32 0.0, %v910
  %v912 = vpop.f32.mrb[0].mxu0
  %v913 = vpop.f32.mrb[0].mxu0
  %v914 = vadd.f32 0.0, %v913
  %v915 = vpop.f32.mrb[0].mxu0
  %916 = vmatprep.mubr.bf16.mxu0 0
  %917 = vmatmul.mubr.bf16.gmra.mrb[0].mxu0 %v776
  %v918 = vpop.f32.mrb[0].mxu0
  %v919 = vadd.f32 0.0, %v918
  %v920 = vpop.f32.mrb[0].mxu0
  %v921 = vpop.f32.mrb[0].mxu0
  %v922 = vadd.f32 0.0, %v921
  %v923 = vpop.f32.mrb[0].mxu0
  %924 = vmatprep.mubr.bf16.mxu0 0
  %925 = vmatmul.mubr.bf16.gmra.mrb[0].mxu0 %v777
  %v926 = vpop.f32.mrb[0].mxu0
  %v927 = vadd.f32 0.0, %v926
  %v928 = vpop.f32.mrb[0].mxu0
  %v929 = vpop.f32.mrb[0].mxu0
  %v930 = vadd.f32 0.0, %v929
  %v931 = vpop.f32.mrb[0].mxu0
  %932 = vmatprep.mubr.bf16.mxu0 0
  %933 = vmatmul.mubr.bf16.gmra.mrb[0].mxu0 %v778
  %v934 = vpop.f32.mrb[0].mxu0
  %v935 = vadd.f32 0.0, %v934
  %v936 = vpop.f32.mrb[0].mxu0
  %v937 = vpop.f32.mrb[0].mxu0
  %v938 = vadd.f32 0.0, %v937
  %v939 = vpop.f32.mrb[0].mxu0
  %940 = vmatprep.mubr.bf16.mxu0 0
  %941 = vmatmul.mubr.bf16.gmra.mrb[0].mxu0 %v779
  %v942 = vpop.f32.mrb[0].mxu0
  %v943 = vadd.f32 0.0, %v942
  %v944 = vpop.f32.mrb[0].mxu0
  %v945 = vpop.f32.mrb[0].mxu0
  %v946 = vadd.f32 0.0, %v945
  %v947 = vpop.f32.mrb[0].mxu0
  %948 = vmatprep.mubr.bf16.mxu0 0
  %949 = vmatmul.mubr.bf16.gmra.mrb[0].mxu0 %v780
  %v950 = vpop.f32.mrb[0].mxu0
  %v951 = vadd.f32 0.0, %v950
  %v952 = vpop.f32.mrb[0].mxu0
  %v953 = vpop.f32.mrb[0].mxu0
  %v954 = vadd.f32 0.0, %v953
  %v955 = vpop.f32.mrb[0].mxu0
  %956 = vmatprep.mubr.bf16.mxu0 0
  %957 = vmatmul.mubr.bf16.gmra.mrb[0].mxu0 %v781
  %v958 = vpop.f32.mrb[0].mxu0
  %v959 = vadd.f32 0.0, %v958
  %v960 = vpop.f32.mrb[0].mxu0
  %v961 = vpop.f32.mrb[0].mxu0
  %v962 = vadd.f32 0.0, %v961
  %v963 = vpop.f32.mrb[0].mxu0
  %964 = vmatprep.mubr.bf16.mxu0 0
  %965 = vmatmul.mubr.bf16.gmra.mrb[0].mxu0 %v782
  %v966 = vpop.f32.mrb[0].mxu0
  %v967 = vadd.f32 0.0, %v966
  %v968 = vpop.f32.mrb[0].mxu0
  %v969 = vpop.f32.mrb[0].mxu0
  %v970 = vadd.f32 0.0, %v969
  %v971 = vpop.f32.mrb[0].mxu0
  %972 = vmatprep.mubr.bf16.mxu0 0
  %973 = vmatmul.mubr.bf16.gmra.mrb[0].mxu0 %v783
  %v974 = vpop.f32.mrb[0].mxu0
  %v975 = vadd.f32 0.0, %v974
  %v976 = vpop.f32.mrb[0].mxu0
  %v977 = vpop.f32.mrb[0].mxu0
  %v978 = vadd.f32 0.0, %v977
  %v979 = vpop.f32.mrb[0].mxu0
  %980 = vmatprep.mubr.bf16.mxu0 0
  %981 = vmatmul.mubr.bf16.gmra.mrb[0].mxu0 %v784
  %v982 = vpop.f32.mrb[0].mxu0
  %v983 = vadd.f32 0.0, %v982
  %v984 = vpop.f32.mrb[0].mxu0
  %v985 = vpop.f32.mrb[0].mxu0
  %v986 = vadd.f32 0.0, %v985
  %v987 = vpop.f32.mrb[0].mxu0
  %988 = vmatprep.mubr.bf16.mxu0 0
  %989 = vmatmul.mubr.bf16.gmra.mrb[0].mxu0 %v785
  %v990 = vpop.f32.mrb[0].mxu0
  %v991 = vadd.f32 0.0, %v990
  %v992 = vpop.f32.mrb[0].mxu0
  %v993 = vpop.f32.mrb[0].mxu0
  %v994 = vadd.f32 0.0, %v993
  %v995 = vpop.f32.mrb[0].mxu0
  %996 = vmatprep.mubr.bf16.mxu0 0
  %997 = vmatmul.mubr.bf16.gmra.mrb[0].mxu0 %v786
  %v998 = vpop.f32.mrb[0].mxu0
  %v999 = vadd.f32 0.0, %v998
  %v1000 = vpop.f32.mrb[0].mxu0
  %v1001 = vpop.f32.mrb[0].mxu0
  %v1002 = vadd.f32 0.0, %v1001
  %v1003 = vpop.f32.mrb[0].mxu0
  %1004 = vmatprep.mubr.bf16.mxu0 0
  %1005 = vmatmul.mubr.bf16.gmra.mrb[0].mxu0 %v787
  %v1006 = vpop.f32.mrb[0].mxu0
  %v1007 = vadd.f32 0.0, %v1006
  %v1008 = vpop.f32.mrb[0].mxu0
  %v1009 = vpop.f32.mrb[0].mxu0
  %v1010 = vadd.f32 0.0, %v1009
  %v1011 = vpop.f32.mrb[0].mxu0
  %1012 = vdwg.mxu0
  %v1013 = vpack.c.bf16 %v890, %v887
  %v1014 = vpack.c.bf16 %v898, %v895
  %v1015 = vpack.c.bf16 %v906, %v903
  %v1016 = vpack.c.bf16 %v914, %v911
  %v1017 = vpack.c.bf16 %v922, %v919
  %v1018 = vpack.c.bf16 %v930, %v927
  %v1019 = vpack.c.bf16 %v938, %v935
  %v1020 = vpack.c.bf16 %v946, %v943
  %v1021 = vpack.c.bf16 %v954, %v951
  %v1022 = vpack.c.bf16 %v962, %v959
  %v1023 = vpack.c.bf16 %v970, %v967
  %v1024 = vpack.c.bf16 %v978, %v975
  %v1025 = vpack.c.bf16 %v986, %v983
  %v1026 = vpack.c.bf16 %v994, %v991
  %v1027 = vpack.c.bf16 %v1002, %v999
  %v1028 = vpack.c.bf16 %v1010, %v1007
  %1029 = vmatprep.subr.bf16.mxu0 0
  %1030 = vmatpush1.bf16.msra.mxu0 %v1013
  %1031 = vmatprep.subr.bf16.mxu0 0
  %1032 = vmatpush1.bf16.msra.mxu0 %v1014
  %1033 = vmatprep.subr.bf16.mxu0 0
  %1034 = vmatpush1.bf16.msra.mxu0 %v1015
  %1035 = vmatprep.subr.bf16.mxu0 0
  %1036 = vmatpush1.bf16.msra.mxu0 %v1016
  %1037 = vmatprep.subr.bf16.mxu0 0
  %1038 = vmatpush1.bf16.msra.mxu0 %v1017
  %1039 = vmatprep.subr.bf16.mxu0 0
  %1040 = vmatpush1.bf16.msra.mxu0 %v1018
  %1041 = vmatprep.subr.bf16.mxu0 0
  %1042 = vmatpush1.bf16.msra.mxu0 %v1019
  %1043 = vmatprep.subr.bf16.mxu0 0
  %1044 = vmatpush1.bf16.msra.mxu0 %v1020
  %1045 = vmatprep.subr.bf16.mxu0 0
  %1046 = vmatpush1.bf16.msra.mxu0 %v1021
  %1047 = vmatprep.subr.bf16.mxu0 0
  %1048 = vmatpush1.bf16.msra.mxu0 %v1022
  %1049 = vmatprep.subr.bf16.mxu0 0
  %1050 = vmatpush1.bf16.msra.mxu0 %v1023
  %1051 = vmatprep.subr.bf16.mxu0 0
  %1052 = vmatpush1.bf16.msra.mxu0 %v1024
  %1053 = vmatprep.subr.bf16.mxu0 0
  %1054 = vmatpush1.bf16.msra.mxu0 %v1025
  %1055 = vmatprep.subr.bf16.mxu0 0
  %1056 = vmatpush1.bf16.msra.mxu0 %v1026
  %1057 = vmatprep.subr.bf16.mxu0 0
  %1058 = vmatpush1.bf16.msra.mxu0 %v1027
  %1059 = vmatprep.subr.bf16.mxu0 0
  %1060 = vmatpush1.bf16.msra.mxu0 %v1028
  %1061 = vmatprep.mubr.bf16.mxu0 %v516
  %1062 = vmatmul.mubr.bf16.gmra.mrb[0].mxu0 %v515
  %v1063 = vpop.f32.mrb[0].mxu0
  %v1064 = vadd.f32 0.0, %v1063
  %v1065 = vpop.f32.mrb[0].mxu0
  %v1066 = vpop.f32.mrb[0].mxu0
  %v1067 = vadd.f32 0.0, %v1066
  %v1068 = vpop.f32.mrb[0].mxu0
  %1069 = vmatprep.mubr.bf16.mxu0 %v518
  %1070 = vmatmul.mubr.bf16.gmra.mrb[0].mxu0 %v517
  %v1071 = vpop.f32.mrb[0].mxu0
  %v1072 = vadd.f32 0.0, %v1071
  %v1073 = vpop.f32.mrb[0].mxu0
  %v1074 = vpop.f32.mrb[0].mxu0
  %v1075 = vadd.f32 0.0, %v1074
  %v1076 = vpop.f32.mrb[0].mxu0
  %1077 = vmatprep.mubr.bf16.mxu0 %v520
  %1078 = vmatmul.mubr.bf16.gmra.mrb[0].mxu0 %v519
  %v1079 = vpop.f32.mrb[0].mxu0
  %v1080 = vadd.f32 0.0, %v1079
  %v1081 = vpop.f32.mrb[0].mxu0
  %v1082 = vpop.f32.mrb[0].mxu0
  %v1083 = vadd.f32 0.0, %v1082
  %v1084 = vpop.f32.mrb[0].mxu0
  %1085 = vmatprep.mubr.bf16.mxu0 %v522
  %1086 = vmatmul.mubr.bf16.gmra.mrb[0].mxu0 %v521
  %v1087 = vpop.f32.mrb[0].mxu0
  %v1088 = vadd.f32 0.0, %v1087
  %v1089 = vpop.f32.mrb[0].mxu0
  %v1090 = vpop.f32.mrb[0].mxu0
  %v1091 = vadd.f32 0.0, %v1090
  %v1092 = vpop.f32.mrb[0].mxu0
  %1093 = vmatprep.mubr.bf16.mxu0 %v524
  %1094 = vmatmul.mubr.bf16.gmra.mrb[0].mxu0 %v523
  %v1095 = vpop.f32.mrb[0].mxu0
  %v1096 = vadd.f32 0.0, %v1095
  %v1097 = vpop.f32.mrb[0].mxu0
  %v1098 = vpop.f32.mrb[0].mxu0
  %v1099 = vadd.f32 0.0, %v1098
  %v1100 = vpop.f32.mrb[0].mxu0
  %1101 = vmatprep.mubr.bf16.mxu0 %v526
  %1102 = vmatmul.mubr.bf16.gmra.mrb[0].mxu0 %v525
  %v1103 = vpop.f32.mrb[0].mxu0
  %v1104 = vadd.f32 0.0, %v1103
  %v1105 = vpop.f32.mrb[0].mxu0
  %v1106 = vpop.f32.mrb[0].mxu0
  %v1107 = vadd.f32 0.0, %v1106
  %v1108 = vpop.f32.mrb[0].mxu0
  %1109 = vmatprep.mubr.bf16.mxu0 %v528
  %1110 = vmatmul.mubr.bf16.gmra.mrb[0].mxu0 %v527
  %v1111 = vpop.f32.mrb[0].mxu0
  %v1112 = vadd.f32 0.0, %v1111
  %v1113 = vpop.f32.mrb[0].mxu0
  %v1114 = vpop.f32.mrb[0].mxu0
  %v1115 = vadd.f32 0.0, %v1114
  %v1116 = vpop.f32.mrb[0].mxu0
  %1117 = vmatprep.mubr.bf16.mxu0 %v530
  %1118 = vmatmul.mubr.bf16.gmra.mrb[0].mxu0 %v529
  %v1119 = vpop.f32.mrb[0].mxu0
  %v1120 = vadd.f32 0.0, %v1119
  %v1121 = vpop.f32.mrb[0].mxu0
  %v1122 = vpop.f32.mrb[0].mxu0
  %v1123 = vadd.f32 0.0, %v1122
  %v1124 = vpop.f32.mrb[0].mxu0
  %1125 = vmatprep.mubr.bf16.mxu0 %v532
  %1126 = vmatmul.mubr.bf16.gmra.mrb[0].mxu0 %v531
  %v1127 = vpop.f32.mrb[0].mxu0
  %v1128 = vadd.f32 0.0, %v1127
  %v1129 = vpop.f32.mrb[0].mxu0
  %v1130 = vpop.f32.mrb[0].mxu0
  %v1131 = vadd.f32 0.0, %v1130
  %v1132 = vpop.f32.mrb[0].mxu0
  %1133 = vmatprep.mubr.bf16.mxu0 %v534
  %1134 = vmatmul.mubr.bf16.gmra.mrb[0].mxu0 %v533
  %v1135 = vpop.f32.mrb[0].mxu0
  %v1136 = vadd.f32 0.0, %v1135
  %v1137 = vpop.f32.mrb[0].mxu0
  %v1138 = vpop.f32.mrb[0].mxu0
  %v1139 = vadd.f32 0.0, %v1138
  %v1140 = vpop.f32.mrb[0].mxu0
  %1141 = vmatprep.mubr.bf16.mxu0 %v536
  %1142 = vmatmul.mubr.bf16.gmra.mrb[0].mxu0 %v535
  %v1143 = vpop.f32.mrb[0].mxu0
  %v1144 = vadd.f32 0.0, %v1143
  %v1145 = vpop.f32.mrb[0].mxu0
  %v1146 = vpop.f32.mrb[0].mxu0
  %v1147 = vadd.f32 0.0, %v1146
  %v1148 = vpop.f32.mrb[0].mxu0
  %1149 = vmatprep.mubr.bf16.mxu0 %v538
  %1150 = vmatmul.mubr.bf16.gmra.mrb[0].mxu0 %v537
  %v1151 = vpop.f32.mrb[0].mxu0
  %v1152 = vadd.f32 0.0, %v1151
  %v1153 = vpop.f32.mrb[0].mxu0
  %v1154 = vpop.f32.mrb[0].mxu0
  %v1155 = vadd.f32 0.0, %v1154
  %v1156 = vpop.f32.mrb[0].mxu0
  %1157 = vmatprep.mubr.bf16.mxu0 %v540
  %1158 = vmatmul.mubr.bf16.gmra.mrb[0].mxu0 %v539
  %v1159 = vpop.f32.mrb[0].mxu0
  %v1160 = vadd.f32 0.0, %v1159
  %v1161 = vpop.f32.mrb[0].mxu0
  %v1162 = vpop.f32.mrb[0].mxu0
  %v1163 = vadd.f32 0.0, %v1162
  %v1164 = vpop.f32.mrb[0].mxu0
  %1165 = vmatprep.mubr.bf16.mxu0 %v542
  %1166 = vmatmul.mubr.bf16.gmra.mrb[0].mxu0 %v541
  %v1167 = vpop.f32.mrb[0].mxu0
  %v1168 = vadd.f32 0.0, %v1167
  %v1169 = vpop.f32.mrb[0].mxu0
  %v1170 = vpop.f32.mrb[0].mxu0
  %v1171 = vadd.f32 0.0, %v1170
  %v1172 = vpop.f32.mrb[0].mxu0
  %1173 = vmatprep.mubr.bf16.mxu0 %v544
  %1174 = vmatmul.mubr.bf16.gmra.mrb[0].mxu0 %v543
  %v1175 = vpop.f32.mrb[0].mxu0
  %v1176 = vadd.f32 0.0, %v1175
  %v1177 = vpop.f32.mrb[0].mxu0
  %v1178 = vpop.f32.mrb[0].mxu0
  %v1179 = vadd.f32 0.0, %v1178
  %v1180 = vpop.f32.mrb[0].mxu0
  %1181 = vmatprep.mubr.bf16.mxu0 %v546
  %1182 = vmatmul.mubr.bf16.gmra.mrb[0].mxu0 %v545
  %v1183 = vpop.f32.mrb[0].mxu0
  %v1184 = vadd.f32 0.0, %v1183
  %v1185 = vpop.f32.mrb[0].mxu0
  %v1186 = vpop.f32.mrb[0].mxu0
  %v1187 = vadd.f32 0.0, %v1186
  %v1188 = vpop.f32.mrb[0].mxu0
  %1189 = vdwg.mxu0
  %1190 = vst [vmem:[%s4] sm:$0xff] %v1064
  %1191 = vst [vmem:[%s4 + $0x8] sm:$0xff] %v1067
  %1192 = vst [vmem:[%s4 + $0x10] sm:$0xff] %v1072
  %1193 = vst [vmem:[%s4 + $0x18] sm:$0xff] %v1075
  %1194 = vst [vmem:[%s4 + $0x20] sm:$0xff] %v1080
  %1195 = vst [vmem:[%s4 + $0x28] sm:$0xff] %v1083
  %1196 = vst [vmem:[%s4 + $0x30] sm:$0xff] %v1088
  %1197 = vst [vmem:[%s4 + $0x38] sm:$0xff] %v1091
  %1198 = vst [vmem:[%s4 + $0x40] sm:$0xff] %v1096
  %1199 = vst [vmem:[%s4 + $0x48] sm:$0xff] %v1099
  %1200 = vst [vmem:[%s4 + $0x50] sm:$0xff] %v1104
  %1201 = vst [vmem:[%s4 + $0x58] sm:$0xff] %v1107
  %1202 = vst [vmem:[%s4 + $0x60] sm:$0xff] %v1112
  %1203 = vst [vmem:[%s4 + $0x68] sm:$0xff] %v1115
  %1204 = vst [vmem:[%s4 + $0x70] sm:$0xff] %v1120
  %1205 = vst [vmem:[%s4 + $0x78] sm:$0xff] %v1123
  %1206 = vst [vmem:[%s4 + $0x80] sm:$0xff] %v1128
  %1207 = vst [vmem:[%s4 + $0x88] sm:$0xff] %v1131
  %1208 = vst [vmem:[%s4 + $0x90] sm:$0xff] %v1136
  %1209 = vst [vmem:[%s4 + $0x98] sm:$0xff] %v1139
  %1210 = vst [vmem:[%s4 + $0xa0] sm:$0xff] %v1144
  %1211 = vst [vmem:[%s4 + $0xa8] sm:$0xff] %v1147
  %1212 = vst [vmem:[%s4 + $0xb0] sm:$0xff] %v1152
  %1213 = vst [vmem:[%s4 + $0xb8] sm:$0xff] %v1155
  %1214 = vst [vmem:[%s4 + $0xc0] sm:$0xff] %v1160
  %1215 = vst [vmem:[%s4 + $0xc8] sm:$0xff] %v1163
  %1216 = vst [vmem:[%s4 + $0xd0] sm:$0xff] %v1168
  %1217 = vst [vmem:[%s4 + $0xd8] sm:$0xff] %v1171
  %1218 = vst [vmem:[%s4 + $0xe0] sm:$0xff] %v1176
  %1219 = vst [vmem:[%s4 + $0xe8] sm:$0xff] %v1179
  %1220 = vst [vmem:[%s4 + $0xf0] sm:$0xff] %v1184
  %1221 = vst [vmem:[%s4 + $0xf8] sm:$0xff] %v1187
  // Predicated region
  $region18: #{gcn_vae_forward.1} parent=0 // pred_check
    _
  $region19: #{gcn_vae_forward.1} parent=0 // pred_check_branch
    %1223 = sbr.rel (0) target = $region21
  $region20: #{gcn_vae_forward.1} parent=0 // pred_region
    _
  $region21: #{gcn_vae_forward.1} parent=0 // pred_fallthru
    _
  // Predicated region
  $region22: #{gcn_vae_forward.1} parent=0 // pred_check
    _
  $region23: #{gcn_vae_forward.1} parent=0 // pred_check_branch
    %1225 = sbr.rel (0) target = $region25
  $region24: #{gcn_vae_forward.1} parent=0 // pred_region
    _
  $region25: #{gcn_vae_forward.1} parent=0 // pred_fallthru
    _

</llo_original>
